<compile_context>
chip_gen: v7x
topology: tpu7x:2x2x1
jax: 0.10.0
libtpu: 0.0.40
codegen_flags: <defaults>
</compile_context>

<pallas_src>
import functools

import jax
import jax.numpy as jnp
import numpy as np
from jax.experimental import pallas as pl
from jax.experimental.pallas import tpu as pltpu  # noqa: F401  (TPU backend)

# Module hyper-parameters (from the PyTorch file).
INPUT_DIM = 7
HIDDEN_DIM = 2
NUM_LAYERS = 2
SEQ_LENGTH = 8     # -> LSTM "batch" B
N_INPUT = 4        # len(input) -> LSTM time steps T
OUT_FEATURES = 3


# -------------------------- Fused Pallas kernel -----------------------------

def _full_spec(shape):
    zeros = (0,) * len(shape)
    return pl.BlockSpec(shape, lambda: zeros)


def fused_lstm_forward(x2d, wih1_t, whh1_t, b1, wih2_t, whh2_t, b2,
                       wlin_t, blin, *, T, B, H, F):
    """x2d: (T*B, I) seq-major flattened input.  Weights pre-transposed:
    wih1_t (I,4H), whh1_t/wih2_t/whh2_t (H,4H), wlin_t (H,F).  Biases already
    summed (b_ih + b_hh), shaped (1,4H) / (1,F).  Returns (T, F)."""
    I = x2d.shape[1]

    def kernel(x_ref, wih1_ref, whh1_ref, b1_ref,
               wih2_ref, whh2_ref, b2_ref, wlin_ref, blin_ref, out_ref):
        whh1 = whh1_ref[...]
        whh2 = whh2_ref[...]
        wih2 = wih2_ref[...]
        b2 = b2_ref[...]

        # Hoisted layer-1 input projection: one (T*B, I) x (I, 4H) matmul.
        # This is the only MXU op in the kernel.
        zx1 = (jnp.dot(x_ref[...], wih1_ref[...],
                       preferred_element_type=jnp.float32) + b1_ref[...])

        def mac(h, w):
            # (rows, H) x (H, cols) with H=2 as VPU broadcast-MACs: keeps the
            # recurrent / output projections off the MXU (no push/pop latency
            # on the serial chain).
            acc = h[:, 0:1] * w[0:1, :]
            for k in range(1, H):
                acc = acc + h[:, k:k + 1] * w[k:k + 1, :]
            return acc

        def cell(z, c_prev):
            # Full-tile transcendentals (single EUP pass each), then narrow
            # per-gate lane slices.  PyTorch gate order: i, f, g, o.
            sig = jax.nn.sigmoid(z)
            th = jnp.tanh(z)
            i_g = sig[:, 0 * H:1 * H]
            f_g = sig[:, 1 * H:2 * H]
            g_g = th[:, 2 * H:3 * H]
            o_g = sig[:, 3 * H:4 * H]
            c_new = f_g * c_prev + i_g * g_g
            h_new = o_g * jnp.tanh(c_new)
            return h_new, c_new

        zeros = jnp.zeros((B, H), jnp.float32)
        h1, c1, h2, c2 = zeros, zeros, zeros, zeros

        # Fully unrolled recurrence over T; both layers interleaved so the
        # scheduler sees the whole dependency graph.  State lives in vregs.
        # TODO(synk): nn.LSTM inter-layer dropout(0.2) omitted (eval-mode).
        for t in range(T):
            z1 = zx1[t * B:(t + 1) * B, :] + mac(h1, whh1)
            h1, c1 = cell(z1, c1)
            z2 = mac(h1, wih2) + b2 + mac(h2, whh2)
            h2, c2 = cell(z2, c2)

        # lstm_out.view(seq_length, len(input), H)[-1] is a flat reinterpret:
        # it selects timestep T-1, batch rows (B-T)..(B-1)  (requires B >= T).
        last = h2[B - T:B, :]                                # (T, H) == (N, H)
        # Final Linear(H -> F) also as broadcast-MACs (keeps the output tail
        # off the MXU push/pop path).
        out_ref[...] = mac(last, wlin_ref[...]) + blin_ref[...]

    return pl.pallas_call(
        kernel,
        out_shape=jax.ShapeDtypeStruct((T, F), jnp.float32),
        in_specs=[
            _full_spec((T * B, I)),
            _full_spec((I, 4 * H)),
            _full_spec((H, 4 * H)),
            _full_spec((1, 4 * H)),
            _full_spec((H, 4 * H)),
            _full_spec((H, 4 * H)),
            _full_spec((1, 4 * H)),
            _full_spec((H, F)),
            _full_spec((1, F)),
        ],
        out_specs=_full_spec((T, F)),
    )(x2d, wih1_t, whh1_t, b1, wih2_t, whh2_t, b2, wlin_t, blin)


# ----------------------------- Params / wrapper ------------------------------

def init_params(key, input_dim, hidden_dim, num_layers, out_features):
    """Deterministic init matching PyTorch's U(-1/sqrt(H), 1/sqrt(H)) shapes."""
    params = {"lstm": [], "linear": None}
    k = 1.0 / np.sqrt(hidden_dim)
    for layer in range(num_layers):
        in_size = input_dim if layer == 0 else hidden_dim
        key, k1, k2, k3, k4 = jax.random.split(key, 5)
        w_ih = jax.random.uniform(k1, (4 * hidden_dim, in_size), jnp.float32, -k, k)
        w_hh = jax.random.uniform(k2, (4 * hidden_dim, hidden_dim), jnp.float32, -k, k)
        b_ih = jax.random.uniform(k3, (4 * hidden_dim,), jnp.float32, -k, k)
        b_hh = jax.random.uniform(k4, (4 * hidden_dim,), jnp.float32, -k, k)
        params["lstm"].append((w_ih, w_hh, b_ih, b_hh))
    kl = 1.0 / np.sqrt(hidden_dim)
    key, k5, k6 = jax.random.split(key, 3)
    w_lin = jax.random.uniform(k5, (out_features, hidden_dim), jnp.float32, -kl, kl)
    b_lin = jax.random.uniform(k6, (out_features,), jnp.float32, -kl, kl)
    params["linear"] = (w_lin, b_lin)
    return params


@functools.partial(jax.jit, static_argnames=("seq_length", "hidden_dim",
                                              "num_layers"))
def lstm_model_forward(x, params, seq_length, hidden_dim, num_layers):
    """Reproduces LSTM.forward after reset_hidden_state() (zero hidden state),
    as one fused Pallas call.  The weight transposes / bias sums below are
    fused into the same jit-compiled program as the kernel launch."""
    assert num_layers == 2, "fused kernel is specialized for num_layers=2"
    N = x.shape[0]
    T, B, H = N, seq_length, hidden_dim
    assert B >= T, "flat-view 'last' selection requires seq_length >= len(input)"

    x2d = x.reshape(T * B, -1)                               # (T*B, I)
    (w_ih1, w_hh1, b_ih1, b_hh1), (w_ih2, w_hh2, b_ih2, b_hh2) = params["lstm"]
    w_lin, b_lin = params["linear"]

    return fused_lstm_forward(
        x2d,
        jnp.transpose(w_ih1), jnp.transpose(w_hh1), (b_ih1 + b_hh1).reshape(1, -1),
        jnp.transpose(w_ih2), jnp.transpose(w_hh2), (b_ih2 + b_hh2).reshape(1, -1),
        jnp.transpose(w_lin), b_lin.reshape(1, -1),
        T=T, B=B, H=H, F=w_lin.shape[0])


# -------------------------- Pure-JAX reference ------------------------------

def reference_forward(x, params, seq_length, hidden_dim, num_layers):
    N = x.shape[0]
    layer_in = x.reshape(N, seq_length, -1)
    for layer in range(num_layers):
        w_ih, w_hh, b_ih, b_hh = params["lstm"][layer]
        h = jnp.zeros((seq_length, hidden_dim), jnp.float32)
        c = jnp.zeros((seq_length, hidden_dim), jnp.float32)
        outs = []
        for t in range(layer_in.shape[0]):
            z = layer_in[t] @ w_ih.T + h @ w_hh.T + b_ih + b_hh
            i = jax.nn.sigmoid(z[:, 0 * hidden_dim:1 * hidden_dim])
            f = jax.nn.sigmoid(z[:, 1 * hidden_dim:2 * hidden_dim])
            g = jnp.tanh(z[:, 2 * hidden_dim:3 * hidden_dim])
            o = jax.nn.sigmoid(z[:, 3 * hidden_dim:4 * hidden_dim])
            c = f * c + i * g
            h = o * jnp.tanh(c)
            outs.append(h)
        layer_in = jnp.stack(outs, axis=0)
    last = layer_in.reshape(seq_length, N, hidden_dim)[-1]
    w_lin, b_lin = params["linear"]
    return last @ w_lin.T + b_lin


# ------------------------------- Main ----------------------------------------

if __name__ == "__main__":
    key = jax.random.PRNGKey(0)
    key, xkey = jax.random.split(key)
    # input `x` such that input.view(len(input), seq_length, -1) is the identity.
    x = jax.random.normal(xkey, (N_INPUT, SEQ_LENGTH, INPUT_DIM), jnp.float32)

    params = init_params(key, INPUT_DIM, HIDDEN_DIM, NUM_LAYERS, OUT_FEATURES)

    y = lstm_model_forward(x, params, SEQ_LENGTH, HIDDEN_DIM, NUM_LAYERS)
    y = jax.block_until_ready(y)

    y_ref = reference_forward(x, params, SEQ_LENGTH, HIDDEN_DIM, NUM_LAYERS)
    np.testing.assert_allclose(np.asarray(y), np.asarray(y_ref),
                               rtol=1e-5, atol=1e-5)
    assert y.shape == (N_INPUT, OUT_FEATURES)
    print("KERNEL_OK")
</pallas_src>

<mosaic_0001>
module attributes {stable_mosaic.version = 11 : i64} {
  func.func @kernel(%arg0: memref<32x7xf32, #tpu.memory_space<vmem>>, %arg1: memref<7x8xf32, #tpu.memory_space<vmem>>, %arg2: memref<2x8xf32, #tpu.memory_space<vmem>>, %arg3: memref<1x8xf32, #tpu.memory_space<vmem>>, %arg4: memref<2x8xf32, #tpu.memory_space<vmem>>, %arg5: memref<2x8xf32, #tpu.memory_space<vmem>>, %arg6: memref<1x8xf32, #tpu.memory_space<vmem>>, %arg7: memref<2x3xf32, #tpu.memory_space<vmem>>, %arg8: memref<1x3xf32, #tpu.memory_space<vmem>>, %arg9: memref<4x3xf32, #tpu.memory_space<vmem>>) attributes {dimension_semantics = [], scalar_prefetch = 0 : i64, scratch_operands = 0 : i64, tpu.core_type = #tpu.core_type<tc>} {
    %c0 = arith.constant 0 : index
    %c0_0 = arith.constant 0 : index
    %0 = vector.load %arg2[%c0, %c0_0] : memref<2x8xf32, #tpu.memory_space<vmem>>, vector<2x8xf32>
    %c0_1 = arith.constant 0 : index
    %c0_2 = arith.constant 0 : index
    %1 = vector.load %arg5[%c0_1, %c0_2] : memref<2x8xf32, #tpu.memory_space<vmem>>, vector<2x8xf32>
    %c0_3 = arith.constant 0 : index
    %c0_4 = arith.constant 0 : index
    %2 = vector.load %arg4[%c0_3, %c0_4] : memref<2x8xf32, #tpu.memory_space<vmem>>, vector<2x8xf32>
    %c0_5 = arith.constant 0 : index
    %c0_6 = arith.constant 0 : index
    %3 = vector.load %arg6[%c0_5, %c0_6] : memref<1x8xf32, #tpu.memory_space<vmem>>, vector<1x8xf32>
    %c0_7 = arith.constant 0 : index
    %c0_8 = arith.constant 0 : index
    %4 = vector.load %arg0[%c0_7, %c0_8] : memref<32x7xf32, #tpu.memory_space<vmem>>, vector<32x7xf32>
    %c0_9 = arith.constant 0 : index
    %c0_10 = arith.constant 0 : index
    %5 = vector.load %arg1[%c0_9, %c0_10] : memref<7x8xf32, #tpu.memory_space<vmem>>, vector<7x8xf32>
    %cst = arith.constant dense<0.000000e+00> : vector<32x8xf32>
    %6 = tpu.matmul %4, %5, %cst {dimension_numbers = #tpu.dot_dimension_numbers<[1], [0], [0], [1], [0, 0, 1, 1], [], []>} : vector<32x7xf32>, vector<7x8xf32>, vector<32x8xf32> -> vector<32x8xf32>
    %c0_11 = arith.constant 0 : index
    %c0_12 = arith.constant 0 : index
    %7 = vector.load %arg3[%c0_11, %c0_12] : memref<1x8xf32, #tpu.memory_space<vmem>>, vector<1x8xf32>
    %8 = vector.broadcast %7 : vector<1x8xf32> to vector<32x8xf32>
    %9 = arith.addf %6, %8 : vector<32x8xf32>
    %cst_13 = arith.constant 0.000000e+00 : f32
    %10 = vector.broadcast %cst_13 : f32 to vector<8x2xf32>
    %11 = vector.extract_strided_slice %9 {offsets = [0, 0], sizes = [8, 8], strides = [1, 1]} : vector<32x8xf32> to vector<8x8xf32>
    %12 = vector.extract_strided_slice %10 {offsets = [0, 0], sizes = [8, 1], strides = [1, 1]} : vector<8x2xf32> to vector<8x1xf32>
    %13 = vector.extract_strided_slice %0 {offsets = [0, 0], sizes = [1, 8], strides = [1, 1]} : vector<2x8xf32> to vector<1x8xf32>
    %14 = vector.broadcast %12 : vector<8x1xf32> to vector<8x8xf32>
    %15 = vector.broadcast %13 : vector<1x8xf32> to vector<8x8xf32>
    %16 = arith.mulf %14, %15 : vector<8x8xf32>
    %17 = vector.extract_strided_slice %10 {offsets = [0, 1], sizes = [8, 1], strides = [1, 1]} : vector<8x2xf32> to vector<8x1xf32>
    %18 = vector.extract_strided_slice %0 {offsets = [1, 0], sizes = [1, 8], strides = [1, 1]} : vector<2x8xf32> to vector<1x8xf32>
    %19 = vector.broadcast %17 : vector<8x1xf32> to vector<8x8xf32>
    %20 = vector.broadcast %18 : vector<1x8xf32> to vector<8x8xf32>
    %21 = arith.mulf %19, %20 : vector<8x8xf32>
    %22 = arith.addf %16, %21 : vector<8x8xf32>
    %23 = arith.addf %11, %22 : vector<8x8xf32>
    %24 = arith.negf %23 : vector<8x8xf32>
    %25 = math.exp %24 : vector<8x8xf32>
    %cst_14 = arith.constant 1.000000e+00 : f32
    %26 = vector.broadcast %cst_14 : f32 to vector<8x8xf32>
    %27 = arith.addf %26, %25 : vector<8x8xf32>
    %28 = arith.divf %26, %27 : vector<8x8xf32>
    %29 = math.tanh %23 : vector<8x8xf32>
    %30 = vector.extract_strided_slice %28 {offsets = [0, 0], sizes = [8, 2], strides = [1, 1]} : vector<8x8xf32> to vector<8x2xf32>
    %31 = vector.extract_strided_slice %28 {offsets = [0, 2], sizes = [8, 2], strides = [1, 1]} : vector<8x8xf32> to vector<8x2xf32>
    %32 = vector.extract_strided_slice %29 {offsets = [0, 4], sizes = [8, 2], strides = [1, 1]} : vector<8x8xf32> to vector<8x2xf32>
    %33 = vector.extract_strided_slice %28 {offsets = [0, 6], sizes = [8, 2], strides = [1, 1]} : vector<8x8xf32> to vector<8x2xf32>
    %34 = arith.mulf %31, %10 : vector<8x2xf32>
    %35 = arith.mulf %30, %32 : vector<8x2xf32>
    %36 = arith.addf %34, %35 : vector<8x2xf32>
    %37 = math.tanh %36 : vector<8x2xf32>
    %38 = arith.mulf %33, %37 : vector<8x2xf32>
    %39 = vector.extract_strided_slice %38 {offsets = [0, 0], sizes = [8, 1], strides = [1, 1]} : vector<8x2xf32> to vector<8x1xf32>
    %40 = vector.extract_strided_slice %2 {offsets = [0, 0], sizes = [1, 8], strides = [1, 1]} : vector<2x8xf32> to vector<1x8xf32>
    %41 = vector.broadcast %39 : vector<8x1xf32> to vector<8x8xf32>
    %42 = vector.broadcast %40 : vector<1x8xf32> to vector<8x8xf32>
    %43 = arith.mulf %41, %42 : vector<8x8xf32>
    %44 = vector.extract_strided_slice %38 {offsets = [0, 1], sizes = [8, 1], strides = [1, 1]} : vector<8x2xf32> to vector<8x1xf32>
    %45 = vector.extract_strided_slice %2 {offsets = [1, 0], sizes = [1, 8], strides = [1, 1]} : vector<2x8xf32> to vector<1x8xf32>
    %46 = vector.broadcast %44 : vector<8x1xf32> to vector<8x8xf32>
    %47 = vector.broadcast %45 : vector<1x8xf32> to vector<8x8xf32>
    %48 = arith.mulf %46, %47 : vector<8x8xf32>
    %49 = arith.addf %43, %48 : vector<8x8xf32>
    %50 = vector.broadcast %3 : vector<1x8xf32> to vector<8x8xf32>
    %51 = arith.addf %49, %50 : vector<8x8xf32>
    %52 = vector.extract_strided_slice %10 {offsets = [0, 0], sizes = [8, 1], strides = [1, 1]} : vector<8x2xf32> to vector<8x1xf32>
    %53 = vector.extract_strided_slice %1 {offsets = [0, 0], sizes = [1, 8], strides = [1, 1]} : vector<2x8xf32> to vector<1x8xf32>
    %54 = vector.broadcast %52 : vector<8x1xf32> to vector<8x8xf32>
    %55 = vector.broadcast %53 : vector<1x8xf32> to vector<8x8xf32>
    %56 = arith.mulf %54, %55 : vector<8x8xf32>
    %57 = vector.extract_strided_slice %10 {offsets = [0, 1], sizes = [8, 1], strides = [1, 1]} : vector<8x2xf32> to vector<8x1xf32>
    %58 = vector.extract_strided_slice %1 {offsets = [1, 0], sizes = [1, 8], strides = [1, 1]} : vector<2x8xf32> to vector<1x8xf32>
    %59 = vector.broadcast %57 : vector<8x1xf32> to vector<8x8xf32>
    %60 = vector.broadcast %58 : vector<1x8xf32> to vector<8x8xf32>
    %61 = arith.mulf %59, %60 : vector<8x8xf32>
    %62 = arith.addf %56, %61 : vector<8x8xf32>
    %63 = arith.addf %51, %62 : vector<8x8xf32>
    %64 = arith.negf %63 : vector<8x8xf32>
    %65 = math.exp %64 : vector<8x8xf32>
    %cst_15 = arith.constant 1.000000e+00 : f32
    %66 = vector.broadcast %cst_15 : f32 to vector<8x8xf32>
    %67 = arith.addf %66, %65 : vector<8x8xf32>
    %68 = arith.divf %66, %67 : vector<8x8xf32>
    %69 = math.tanh %63 : vector<8x8xf32>
    %70 = vector.extract_strided_slice %68 {offsets = [0, 0], sizes = [8, 2], strides = [1, 1]} : vector<8x8xf32> to vector<8x2xf32>
    %71 = vector.extract_strided_slice %68 {offsets = [0, 2], sizes = [8, 2], strides = [1, 1]} : vector<8x8xf32> to vector<8x2xf32>
    %72 = vector.extract_strided_slice %69 {offsets = [0, 4], sizes = [8, 2], strides = [1, 1]} : vector<8x8xf32> to vector<8x2xf32>
    %73 = vector.extract_strided_slice %68 {offsets = [0, 6], sizes = [8, 2], strides = [1, 1]} : vector<8x8xf32> to vector<8x2xf32>
    %74 = arith.mulf %71, %10 : vector<8x2xf32>
    %75 = arith.mulf %70, %72 : vector<8x2xf32>
    %76 = arith.addf %74, %75 : vector<8x2xf32>
    %77 = math.tanh %76 : vector<8x2xf32>
    %78 = arith.mulf %73, %77 : vector<8x2xf32>
    %79 = vector.extract_strided_slice %9 {offsets = [8, 0], sizes = [8, 8], strides = [1, 1]} : vector<32x8xf32> to vector<8x8xf32>
    %80 = vector.extract_strided_slice %38 {offsets = [0, 0], sizes = [8, 1], strides = [1, 1]} : vector<8x2xf32> to vector<8x1xf32>
    %81 = vector.extract_strided_slice %0 {offsets = [0, 0], sizes = [1, 8], strides = [1, 1]} : vector<2x8xf32> to vector<1x8xf32>
    %82 = vector.broadcast %80 : vector<8x1xf32> to vector<8x8xf32>
    %83 = vector.broadcast %81 : vector<1x8xf32> to vector<8x8xf32>
    %84 = arith.mulf %82, %83 : vector<8x8xf32>
    %85 = vector.extract_strided_slice %38 {offsets = [0, 1], sizes = [8, 1], strides = [1, 1]} : vector<8x2xf32> to vector<8x1xf32>
    %86 = vector.extract_strided_slice %0 {offsets = [1, 0], sizes = [1, 8], strides = [1, 1]} : vector<2x8xf32> to vector<1x8xf32>
    %87 = vector.broadcast %85 : vector<8x1xf32> to vector<8x8xf32>
    %88 = vector.broadcast %86 : vector<1x8xf32> to vector<8x8xf32>
    %89 = arith.mulf %87, %88 : vector<8x8xf32>
    %90 = arith.addf %84, %89 : vector<8x8xf32>
    %91 = arith.addf %79, %90 : vector<8x8xf32>
    %92 = arith.negf %91 : vector<8x8xf32>
    %93 = math.exp %92 : vector<8x8xf32>
    %cst_16 = arith.constant 1.000000e+00 : f32
    %94 = vector.broadcast %cst_16 : f32 to vector<8x8xf32>
    %95 = arith.addf %94, %93 : vector<8x8xf32>
    %96 = arith.divf %94, %95 : vector<8x8xf32>
    %97 = math.tanh %91 : vector<8x8xf32>
    %98 = vector.extract_strided_slice %96 {offsets = [0, 0], sizes = [8, 2], strides = [1, 1]} : vector<8x8xf32> to vector<8x2xf32>
    %99 = vector.extract_strided_slice %96 {offsets = [0, 2], sizes = [8, 2], strides = [1, 1]} : vector<8x8xf32> to vector<8x2xf32>
    %100 = vector.extract_strided_slice %97 {offsets = [0, 4], sizes = [8, 2], strides = [1, 1]} : vector<8x8xf32> to vector<8x2xf32>
    %101 = vector.extract_strided_slice %96 {offsets = [0, 6], sizes = [8, 2], strides = [1, 1]} : vector<8x8xf32> to vector<8x2xf32>
    %102 = arith.mulf %99, %36 : vector<8x2xf32>
    %103 = arith.mulf %98, %100 : vector<8x2xf32>
    %104 = arith.addf %102, %103 : vector<8x2xf32>
    %105 = math.tanh %104 : vector<8x2xf32>
    %106 = arith.mulf %101, %105 : vector<8x2xf32>
    %107 = vector.extract_strided_slice %106 {offsets = [0, 0], sizes = [8, 1], strides = [1, 1]} : vector<8x2xf32> to vector<8x1xf32>
    %108 = vector.extract_strided_slice %2 {offsets = [0, 0], sizes = [1, 8], strides = [1, 1]} : vector<2x8xf32> to vector<1x8xf32>
    %109 = vector.broadcast %107 : vector<8x1xf32> to vector<8x8xf32>
    %110 = vector.broadcast %108 : vector<1x8xf32> to vector<8x8xf32>
    %111 = arith.mulf %109, %110 : vector<8x8xf32>
    %112 = vector.extract_strided_slice %106 {offsets = [0, 1], sizes = [8, 1], strides = [1, 1]} : vector<8x2xf32> to vector<8x1xf32>
    %113 = vector.extract_strided_slice %2 {offsets = [1, 0], sizes = [1, 8], strides = [1, 1]} : vector<2x8xf32> to vector<1x8xf32>
    %114 = vector.broadcast %112 : vector<8x1xf32> to vector<8x8xf32>
    %115 = vector.broadcast %113 : vector<1x8xf32> to vector<8x8xf32>
    %116 = arith.mulf %114, %115 : vector<8x8xf32>
    %117 = arith.addf %111, %116 : vector<8x8xf32>
    %118 = vector.broadcast %3 : vector<1x8xf32> to vector<8x8xf32>
    %119 = arith.addf %117, %118 : vector<8x8xf32>
    %120 = vector.extract_strided_slice %78 {offsets = [0, 0], sizes = [8, 1], strides = [1, 1]} : vector<8x2xf32> to vector<8x1xf32>
    %121 = vector.extract_strided_slice %1 {offsets = [0, 0], sizes = [1, 8], strides = [1, 1]} : vector<2x8xf32> to vector<1x8xf32>
    %122 = vector.broadcast %120 : vector<8x1xf32> to vector<8x8xf32>
    %123 = vector.broadcast %121 : vector<1x8xf32> to vector<8x8xf32>
    %124 = arith.mulf %122, %123 : vector<8x8xf32>
    %125 = vector.extract_strided_slice %78 {offsets = [0, 1], sizes = [8, 1], strides = [1, 1]} : vector<8x2xf32> to vector<8x1xf32>
    %126 = vector.extract_strided_slice %1 {offsets = [1, 0], sizes = [1, 8], strides = [1, 1]} : vector<2x8xf32> to vector<1x8xf32>
    %127 = vector.broadcast %125 : vector<8x1xf32> to vector<8x8xf32>
    %128 = vector.broadcast %126 : vector<1x8xf32> to vector<8x8xf32>
    %129 = arith.mulf %127, %128 : vector<8x8xf32>
    %130 = arith.addf %124, %129 : vector<8x8xf32>
    %131 = arith.addf %119, %130 : vector<8x8xf32>
    %132 = arith.negf %131 : vector<8x8xf32>
    %133 = math.exp %132 : vector<8x8xf32>
    %cst_17 = arith.constant 1.000000e+00 : f32
    %134 = vector.broadcast %cst_17 : f32 to vector<8x8xf32>
    %135 = arith.addf %134, %133 : vector<8x8xf32>
    %136 = arith.divf %134, %135 : vector<8x8xf32>
    %137 = math.tanh %131 : vector<8x8xf32>
    %138 = vector.extract_strided_slice %136 {offsets = [0, 0], sizes = [8, 2], strides = [1, 1]} : vector<8x8xf32> to vector<8x2xf32>
    %139 = vector.extract_strided_slice %136 {offsets = [0, 2], sizes = [8, 2], strides = [1, 1]} : vector<8x8xf32> to vector<8x2xf32>
    %140 = vector.extract_strided_slice %137 {offsets = [0, 4], sizes = [8, 2], strides = [1, 1]} : vector<8x8xf32> to vector<8x2xf32>
    %141 = vector.extract_strided_slice %136 {offsets = [0, 6], sizes = [8, 2], strides = [1, 1]} : vector<8x8xf32> to vector<8x2xf32>
    %142 = arith.mulf %139, %76 : vector<8x2xf32>
    %143 = arith.mulf %138, %140 : vector<8x2xf32>
    %144 = arith.addf %142, %143 : vector<8x2xf32>
    %145 = math.tanh %144 : vector<8x2xf32>
    %146 = arith.mulf %141, %145 : vector<8x2xf32>
    %147 = vector.extract_strided_slice %9 {offsets = [16, 0], sizes = [8, 8], strides = [1, 1]} : vector<32x8xf32> to vector<8x8xf32>
    %148 = vector.extract_strided_slice %106 {offsets = [0, 0], sizes = [8, 1], strides = [1, 1]} : vector<8x2xf32> to vector<8x1xf32>
    %149 = vector.extract_strided_slice %0 {offsets = [0, 0], sizes = [1, 8], strides = [1, 1]} : vector<2x8xf32> to vector<1x8xf32>
    %150 = vector.broadcast %148 : vector<8x1xf32> to vector<8x8xf32>
    %151 = vector.broadcast %149 : vector<1x8xf32> to vector<8x8xf32>
    %152 = arith.mulf %150, %151 : vector<8x8xf32>
    %153 = vector.extract_strided_slice %106 {offsets = [0, 1], sizes = [8, 1], strides = [1, 1]} : vector<8x2xf32> to vector<8x1xf32>
    %154 = vector.extract_strided_slice %0 {offsets = [1, 0], sizes = [1, 8], strides = [1, 1]} : vector<2x8xf32> to vector<1x8xf32>
    %155 = vector.broadcast %153 : vector<8x1xf32> to vector<8x8xf32>
    %156 = vector.broadcast %154 : vector<1x8xf32> to vector<8x8xf32>
    %157 = arith.mulf %155, %156 : vector<8x8xf32>
    %158 = arith.addf %152, %157 : vector<8x8xf32>
    %159 = arith.addf %147, %158 : vector<8x8xf32>
    %160 = arith.negf %159 : vector<8x8xf32>
    %161 = math.exp %160 : vector<8x8xf32>
    %cst_18 = arith.constant 1.000000e+00 : f32
    %162 = vector.broadcast %cst_18 : f32 to vector<8x8xf32>
    %163 = arith.addf %162, %161 : vector<8x8xf32>
    %164 = arith.divf %162, %163 : vector<8x8xf32>
    %165 = math.tanh %159 : vector<8x8xf32>
    %166 = vector.extract_strided_slice %164 {offsets = [0, 0], sizes = [8, 2], strides = [1, 1]} : vector<8x8xf32> to vector<8x2xf32>
    %167 = vector.extract_strided_slice %164 {offsets = [0, 2], sizes = [8, 2], strides = [1, 1]} : vector<8x8xf32> to vector<8x2xf32>
    %168 = vector.extract_strided_slice %165 {offsets = [0, 4], sizes = [8, 2], strides = [1, 1]} : vector<8x8xf32> to vector<8x2xf32>
    %169 = vector.extract_strided_slice %164 {offsets = [0, 6], sizes = [8, 2], strides = [1, 1]} : vector<8x8xf32> to vector<8x2xf32>
    %170 = arith.mulf %167, %104 : vector<8x2xf32>
    %171 = arith.mulf %166, %168 : vector<8x2xf32>
    %172 = arith.addf %170, %171 : vector<8x2xf32>
    %173 = math.tanh %172 : vector<8x2xf32>
    %174 = arith.mulf %169, %173 : vector<8x2xf32>
    %175 = vector.extract_strided_slice %174 {offsets = [0, 0], sizes = [8, 1], strides = [1, 1]} : vector<8x2xf32> to vector<8x1xf32>
    %176 = vector.extract_strided_slice %2 {offsets = [0, 0], sizes = [1, 8], strides = [1, 1]} : vector<2x8xf32> to vector<1x8xf32>
    %177 = vector.broadcast %175 : vector<8x1xf32> to vector<8x8xf32>
    %178 = vector.broadcast %176 : vector<1x8xf32> to vector<8x8xf32>
    %179 = arith.mulf %177, %178 : vector<8x8xf32>
    %180 = vector.extract_strided_slice %174 {offsets = [0, 1], sizes = [8, 1], strides = [1, 1]} : vector<8x2xf32> to vector<8x1xf32>
    %181 = vector.extract_strided_slice %2 {offsets = [1, 0], sizes = [1, 8], strides = [1, 1]} : vector<2x8xf32> to vector<1x8xf32>
    %182 = vector.broadcast %180 : vector<8x1xf32> to vector<8x8xf32>
    %183 = vector.broadcast %181 : vector<1x8xf32> to vector<8x8xf32>
    %184 = arith.mulf %182, %183 : vector<8x8xf32>
    %185 = arith.addf %179, %184 : vector<8x8xf32>
    %186 = vector.broadcast %3 : vector<1x8xf32> to vector<8x8xf32>
    %187 = arith.addf %185, %186 : vector<8x8xf32>
    %188 = vector.extract_strided_slice %146 {offsets = [0, 0], sizes = [8, 1], strides = [1, 1]} : vector<8x2xf32> to vector<8x1xf32>
    %189 = vector.extract_strided_slice %1 {offsets = [0, 0], sizes = [1, 8], strides = [1, 1]} : vector<2x8xf32> to vector<1x8xf32>
    %190 = vector.broadcast %188 : vector<8x1xf32> to vector<8x8xf32>
    %191 = vector.broadcast %189 : vector<1x8xf32> to vector<8x8xf32>
    %192 = arith.mulf %190, %191 : vector<8x8xf32>
    %193 = vector.extract_strided_slice %146 {offsets = [0, 1], sizes = [8, 1], strides = [1, 1]} : vector<8x2xf32> to vector<8x1xf32>
    %194 = vector.extract_strided_slice %1 {offsets = [1, 0], sizes = [1, 8], strides = [1, 1]} : vector<2x8xf32> to vector<1x8xf32>
    %195 = vector.broadcast %193 : vector<8x1xf32> to vector<8x8xf32>
    %196 = vector.broadcast %194 : vector<1x8xf32> to vector<8x8xf32>
    %197 = arith.mulf %195, %196 : vector<8x8xf32>
    %198 = arith.addf %192, %197 : vector<8x8xf32>
    %199 = arith.addf %187, %198 : vector<8x8xf32>
    %200 = arith.negf %199 : vector<8x8xf32>
    %201 = math.exp %200 : vector<8x8xf32>
    %cst_19 = arith.constant 1.000000e+00 : f32
    %202 = vector.broadcast %cst_19 : f32 to vector<8x8xf32>
    %203 = arith.addf %202, %201 : vector<8x8xf32>
    %204 = arith.divf %202, %203 : vector<8x8xf32>
    %205 = math.tanh %199 : vector<8x8xf32>
    %206 = vector.extract_strided_slice %204 {offsets = [0, 0], sizes = [8, 2], strides = [1, 1]} : vector<8x8xf32> to vector<8x2xf32>
    %207 = vector.extract_strided_slice %204 {offsets = [0, 2], sizes = [8, 2], strides = [1, 1]} : vector<8x8xf32> to vector<8x2xf32>
    %208 = vector.extract_strided_slice %205 {offsets = [0, 4], sizes = [8, 2], strides = [1, 1]} : vector<8x8xf32> to vector<8x2xf32>
    %209 = vector.extract_strided_slice %204 {offsets = [0, 6], sizes = [8, 2], strides = [1, 1]} : vector<8x8xf32> to vector<8x2xf32>
    %210 = arith.mulf %207, %144 : vector<8x2xf32>
    %211 = arith.mulf %206, %208 : vector<8x2xf32>
    %212 = arith.addf %210, %211 : vector<8x2xf32>
    %213 = math.tanh %212 : vector<8x2xf32>
    %214 = arith.mulf %209, %213 : vector<8x2xf32>
    %215 = vector.extract_strided_slice %9 {offsets = [24, 0], sizes = [8, 8], strides = [1, 1]} : vector<32x8xf32> to vector<8x8xf32>
    %216 = vector.extract_strided_slice %174 {offsets = [0, 0], sizes = [8, 1], strides = [1, 1]} : vector<8x2xf32> to vector<8x1xf32>
    %217 = vector.extract_strided_slice %0 {offsets = [0, 0], sizes = [1, 8], strides = [1, 1]} : vector<2x8xf32> to vector<1x8xf32>
    %218 = vector.broadcast %216 : vector<8x1xf32> to vector<8x8xf32>
    %219 = vector.broadcast %217 : vector<1x8xf32> to vector<8x8xf32>
    %220 = arith.mulf %218, %219 : vector<8x8xf32>
    %221 = vector.extract_strided_slice %174 {offsets = [0, 1], sizes = [8, 1], strides = [1, 1]} : vector<8x2xf32> to vector<8x1xf32>
    %222 = vector.extract_strided_slice %0 {offsets = [1, 0], sizes = [1, 8], strides = [1, 1]} : vector<2x8xf32> to vector<1x8xf32>
    %223 = vector.broadcast %221 : vector<8x1xf32> to vector<8x8xf32>
    %224 = vector.broadcast %222 : vector<1x8xf32> to vector<8x8xf32>
    %225 = arith.mulf %223, %224 : vector<8x8xf32>
    %226 = arith.addf %220, %225 : vector<8x8xf32>
    %227 = arith.addf %215, %226 : vector<8x8xf32>
    %228 = arith.negf %227 : vector<8x8xf32>
    %229 = math.exp %228 : vector<8x8xf32>
    %cst_20 = arith.constant 1.000000e+00 : f32
    %230 = vector.broadcast %cst_20 : f32 to vector<8x8xf32>
    %231 = arith.addf %230, %229 : vector<8x8xf32>
    %232 = arith.divf %230, %231 : vector<8x8xf32>
    %233 = math.tanh %227 : vector<8x8xf32>
    %234 = vector.extract_strided_slice %232 {offsets = [0, 0], sizes = [8, 2], strides = [1, 1]} : vector<8x8xf32> to vector<8x2xf32>
    %235 = vector.extract_strided_slice %232 {offsets = [0, 2], sizes = [8, 2], strides = [1, 1]} : vector<8x8xf32> to vector<8x2xf32>
    %236 = vector.extract_strided_slice %233 {offsets = [0, 4], sizes = [8, 2], strides = [1, 1]} : vector<8x8xf32> to vector<8x2xf32>
    %237 = vector.extract_strided_slice %232 {offsets = [0, 6], sizes = [8, 2], strides = [1, 1]} : vector<8x8xf32> to vector<8x2xf32>
    %238 = arith.mulf %235, %172 : vector<8x2xf32>
    %239 = arith.mulf %234, %236 : vector<8x2xf32>
    %240 = arith.addf %238, %239 : vector<8x2xf32>
    %241 = math.tanh %240 : vector<8x2xf32>
    %242 = arith.mulf %237, %241 : vector<8x2xf32>
    %243 = vector.extract_strided_slice %242 {offsets = [0, 0], sizes = [8, 1], strides = [1, 1]} : vector<8x2xf32> to vector<8x1xf32>
    %244 = vector.extract_strided_slice %2 {offsets = [0, 0], sizes = [1, 8], strides = [1, 1]} : vector<2x8xf32> to vector<1x8xf32>
    %245 = vector.broadcast %243 : vector<8x1xf32> to vector<8x8xf32>
    %246 = vector.broadcast %244 : vector<1x8xf32> to vector<8x8xf32>
    %247 = arith.mulf %245, %246 : vector<8x8xf32>
    %248 = vector.extract_strided_slice %242 {offsets = [0, 1], sizes = [8, 1], strides = [1, 1]} : vector<8x2xf32> to vector<8x1xf32>
    %249 = vector.extract_strided_slice %2 {offsets = [1, 0], sizes = [1, 8], strides = [1, 1]} : vector<2x8xf32> to vector<1x8xf32>
    %250 = vector.broadcast %248 : vector<8x1xf32> to vector<8x8xf32>
    %251 = vector.broadcast %249 : vector<1x8xf32> to vector<8x8xf32>
    %252 = arith.mulf %250, %251 : vector<8x8xf32>
    %253 = arith.addf %247, %252 : vector<8x8xf32>
    %254 = vector.broadcast %3 : vector<1x8xf32> to vector<8x8xf32>
    %255 = arith.addf %253, %254 : vector<8x8xf32>
    %256 = vector.extract_strided_slice %214 {offsets = [0, 0], sizes = [8, 1], strides = [1, 1]} : vector<8x2xf32> to vector<8x1xf32>
    %257 = vector.extract_strided_slice %1 {offsets = [0, 0], sizes = [1, 8], strides = [1, 1]} : vector<2x8xf32> to vector<1x8xf32>
    %258 = vector.broadcast %256 : vector<8x1xf32> to vector<8x8xf32>
    %259 = vector.broadcast %257 : vector<1x8xf32> to vector<8x8xf32>
    %260 = arith.mulf %258, %259 : vector<8x8xf32>
    %261 = vector.extract_strided_slice %214 {offsets = [0, 1], sizes = [8, 1], strides = [1, 1]} : vector<8x2xf32> to vector<8x1xf32>
    %262 = vector.extract_strided_slice %1 {offsets = [1, 0], sizes = [1, 8], strides = [1, 1]} : vector<2x8xf32> to vector<1x8xf32>
    %263 = vector.broadcast %261 : vector<8x1xf32> to vector<8x8xf32>
    %264 = vector.broadcast %262 : vector<1x8xf32> to vector<8x8xf32>
    %265 = arith.mulf %263, %264 : vector<8x8xf32>
    %266 = arith.addf %260, %265 : vector<8x8xf32>
    %267 = arith.addf %255, %266 : vector<8x8xf32>
    %268 = arith.negf %267 : vector<8x8xf32>
    %269 = math.exp %268 : vector<8x8xf32>
    %cst_21 = arith.constant 1.000000e+00 : f32
    %270 = vector.broadcast %cst_21 : f32 to vector<8x8xf32>
    %271 = arith.addf %270, %269 : vector<8x8xf32>
    %272 = arith.divf %270, %271 : vector<8x8xf32>
    %273 = math.tanh %267 : vector<8x8xf32>
    %274 = vector.extract_strided_slice %272 {offsets = [0, 0], sizes = [8, 2], strides = [1, 1]} : vector<8x8xf32> to vector<8x2xf32>
    %275 = vector.extract_strided_slice %272 {offsets = [0, 2], sizes = [8, 2], strides = [1, 1]} : vector<8x8xf32> to vector<8x2xf32>
    %276 = vector.extract_strided_slice %273 {offsets = [0, 4], sizes = [8, 2], strides = [1, 1]} : vector<8x8xf32> to vector<8x2xf32>
    %277 = vector.extract_strided_slice %272 {offsets = [0, 6], sizes = [8, 2], strides = [1, 1]} : vector<8x8xf32> to vector<8x2xf32>
    %278 = arith.mulf %275, %212 : vector<8x2xf32>
    %279 = arith.mulf %274, %276 : vector<8x2xf32>
    %280 = arith.addf %278, %279 : vector<8x2xf32>
    %281 = math.tanh %280 : vector<8x2xf32>
    %282 = arith.mulf %277, %281 : vector<8x2xf32>
    %283 = vector.extract_strided_slice %282 {offsets = [4, 0], sizes = [4, 2], strides = [1, 1]} : vector<8x2xf32> to vector<4x2xf32>
    %c0_22 = arith.constant 0 : index
    %c0_23 = arith.constant 0 : index
    %284 = vector.load %arg7[%c0_22, %c0_23] : memref<2x3xf32, #tpu.memory_space<vmem>>, vector<2x3xf32>
    %285 = vector.extract_strided_slice %283 {offsets = [0, 0], sizes = [4, 1], strides = [1, 1]} : vector<4x2xf32> to vector<4x1xf32>
    %286 = vector.extract_strided_slice %284 {offsets = [0, 0], sizes = [1, 3], strides = [1, 1]} : vector<2x3xf32> to vector<1x3xf32>
    %287 = vector.broadcast %285 : vector<4x1xf32> to vector<4x3xf32>
    %288 = vector.broadcast %286 : vector<1x3xf32> to vector<4x3xf32>
    %289 = arith.mulf %287, %288 : vector<4x3xf32>
    %290 = vector.extract_strided_slice %283 {offsets = [0, 1], sizes = [4, 1], strides = [1, 1]} : vector<4x2xf32> to vector<4x1xf32>
    %291 = vector.extract_strided_slice %284 {offsets = [1, 0], sizes = [1, 3], strides = [1, 1]} : vector<2x3xf32> to vector<1x3xf32>
    %292 = vector.broadcast %290 : vector<4x1xf32> to vector<4x3xf32>
    %293 = vector.broadcast %291 : vector<1x3xf32> to vector<4x3xf32>
    %294 = arith.mulf %292, %293 : vector<4x3xf32>
    %295 = arith.addf %289, %294 : vector<4x3xf32>
    %c0_24 = arith.constant 0 : index
    %c0_25 = arith.constant 0 : index
    %296 = vector.load %arg8[%c0_24, %c0_25] : memref<1x3xf32, #tpu.memory_space<vmem>>, vector<1x3xf32>
    %297 = vector.broadcast %296 : vector<1x3xf32> to vector<4x3xf32>
    %298 = arith.addf %295, %297 : vector<4x3xf32>
    %c0_26 = arith.constant 0 : index
    %c0_27 = arith.constant 0 : index
    %299 = vector.load %arg9[%c0_26, %c0_27] : memref<4x3xf32, #tpu.memory_space<vmem>>, vector<4x3xf32>
    tpu.vector_store %arg9[%c0_26, %c0_27], %298 {strides = array<i32>} : memref<4x3xf32, #tpu.memory_space<vmem>>, vector<4x3xf32>,
    return
  }
}

</mosaic_0001>

<llo_original>
// kernel: lstm_model_forward.1
$region0: #{lstm_model_forward.1}
  #allocation0 [shape = 'u32[]', space=smem, size = 0x4, offset = 0x4, fixed_abs, tag = 'smem constant byte address 0x4 - core index']
  #allocation1 [shape = 'u32[144,128]{1,0:T(1,128)}', space=vmem, size = 0x12000, scoped, tag = 'internal scratch']
  %s0 = inlined_call_operand.vmem [shape: f32[32,7], index: 0, kind: input, shape index: {}]
  %s1 = inlined_call_operand.vmem [shape: f32[7,8], index: 1, kind: input, shape index: {}]
  %s2 = inlined_call_operand.vmem [shape: f32[2,8], index: 2, kind: input, shape index: {}]
  %s3 = inlined_call_operand.vmem [shape: f32[1,8], index: 3, kind: input, shape index: {}]
  %s4 = inlined_call_operand.vmem [shape: f32[2,8], index: 4, kind: input, shape index: {}]
  %s5 = inlined_call_operand.vmem [shape: f32[2,8], index: 5, kind: input, shape index: {}]
  %s6 = inlined_call_operand.vmem [shape: f32[1,8], index: 6, kind: input, shape index: {}]
  %s7 = inlined_call_operand.vmem [shape: f32[2,3], index: 7, kind: input, shape index: {}]
  %s8 = inlined_call_operand.vmem [shape: f32[1,3], index: 8, kind: input, shape index: {}]
  %s9 = inlined_call_operand.hbm [shape: f32[4,3], index: 9, kind: output, shape index: {}]
  %s10 = sld [smem:[#allocation0]]
  $region46: #{lstm_model_forward.1} parent=0
    _
  %s12 = ssub.s32 1, %s10
  %s13 = scalar_select 0, %s12, %s10
  $region1: #{lstm_model_forward.1} parent=0
    #allocation2 [shape = 'u8[2048]{0}', space=vmem, size = 0x800, scoped, tag = 'output window, operand 0, single buffered']
    #allocation3 [shape = 's32[1]{0}', space=sflag, size = 0x4, scoped, tag = 'scoped memory for lstm_model_forward.1']
    %14 = vsyncpa [#allocation3], 0
    // Predicated region
    $region2: #{lstm_model_forward.1} parent=1 // pred_check
      _
    $region3: #{lstm_model_forward.1} parent=1 // pred_check_branch
      %16 = sbr.rel (0) target = $region5
    $region4: #{lstm_model_forward.1} parent=1 // pred_region
      _
    $region5: #{lstm_model_forward.1} parent=1 // pred_fallthru
      _
    // Predicated region
    $region6: #{lstm_model_forward.1} parent=1 // pred_check
      _
    $region7: #{lstm_model_forward.1} parent=1 // pred_check_branch
      %18 = sbr.rel (0) target = $region9
    $region8: #{lstm_model_forward.1} parent=1 // pred_region
      _
    $region9: #{lstm_model_forward.1} parent=1 // pred_fallthru
      _
    // Predicated region
    $region10: #{lstm_model_forward.1} parent=1 // pred_check
      _
    $region11: #{lstm_model_forward.1} parent=1 // pred_check_branch
      %20 = sbr.rel (0) target = $region13
    $region12: #{lstm_model_forward.1} parent=1 // pred_region
      _
    $region13: #{lstm_model_forward.1} parent=1 // pred_fallthru
      _
    // Predicated region
    $region14: #{lstm_model_forward.1} parent=1 // pred_check
      _
    $region15: #{lstm_model_forward.1} parent=1 // pred_check_branch
      %22 = sbr.rel (0) target = $region17
    $region16: #{lstm_model_forward.1} parent=1 // pred_region
      _
    $region17: #{lstm_model_forward.1} parent=1 // pred_fallthru
      _
    // Predicated region
    $region18: #{lstm_model_forward.1} parent=1 // pred_check
      _
    $region19: #{lstm_model_forward.1} parent=1 // pred_check_branch
      %24 = sbr.rel (0) target = $region21
    $region20: #{lstm_model_forward.1} parent=1 // pred_region
      _
    $region21: #{lstm_model_forward.1} parent=1 // pred_fallthru
      _
    // Predicated region
    $region22: #{lstm_model_forward.1} parent=1 // pred_check
      _
    $region23: #{lstm_model_forward.1} parent=1 // pred_check_branch
      %26 = sbr.rel (0) target = $region25
    $region24: #{lstm_model_forward.1} parent=1 // pred_region
      _
    $region25: #{lstm_model_forward.1} parent=1 // pred_fallthru
      _
    // Predicated region
    $region26: #{lstm_model_forward.1} parent=1 // pred_check
      _
    $region27: #{lstm_model_forward.1} parent=1 // pred_check_branch
      %28 = sbr.rel (0) target = $region29
    $region28: #{lstm_model_forward.1} parent=1 // pred_region
      _
    $region29: #{lstm_model_forward.1} parent=1 // pred_fallthru
      _
    // Predicated region
    $region30: #{lstm_model_forward.1} parent=1 // pred_check
      _
    $region31: #{lstm_model_forward.1} parent=1 // pred_check_branch
      %30 = sbr.rel (0) target = $region33
    $region32: #{lstm_model_forward.1} parent=1 // pred_region
      _
    $region33: #{lstm_model_forward.1} parent=1 // pred_fallthru
      _
    // Predicated region
    $region34: #{lstm_model_forward.1} parent=1 // pred_check
      _
    $region35: #{lstm_model_forward.1} parent=1 // pred_check_branch
      %32 = sbr.rel (0) target = $region37
    $region36: #{lstm_model_forward.1} parent=1 // pred_region
      _
    $region37: #{lstm_model_forward.1} parent=1 // pred_fallthru
      _
    %v33 = vld [vmem:[%s2] sm:$0x3]
    %v34 = vld [vmem:[%s5] sm:$0x3]
    %v35 = vld [vmem:[%s4] sm:$0x3]
    %v36 = vld [vmem:[%s6] sm:$0x1]
    %v37 = vld [vmem:[%s0] sm:$0xff]
    %v38 = vld [vmem:[%s0 + $0x8] sm:$0xff]
    %v39 = vld [vmem:[%s0 + $0x10] sm:$0xff]
    %v40 = vld [vmem:[%s0 + $0x18] sm:$0xff]
    %v41 = vld [vmem:[%s1] sm:$0x7f]
    %v42 = vld [vmem:[%s3] sm:$0x1]
    %v44 = vlaneseq
    %v45 = vshrl.u32 %v44, 7
    %v46 = vsub.s32 0, %v45
    %v47 = vrot.slane %v42, %v46
    %vm49 = vcmask 56320
    %v51 = vsel %vm49, %v37, 0
    %v54 = vsel %vm49, %v38, 0
    %v57 = vsel %vm49, %v39, 0
    %v60 = vsel %vm49, %v40, 0
    %vm62 = vcmask 1046528
    %v64 = vsel %vm62, %v41, 0
    %66 = vmatprep.subr.mxu0 0.0
    %67 = vmatpush1.msra.mxu0 %v64
    %68 = vmatprep.subr.mxu0 0.0
    %69 = vmatpush1.msra.mxu0 0.0
    %70 = vmatprep.subr.mxu0 0.0
    %71 = vmatpush1.msra.mxu0 0.0
    %72 = vmatprep.subr.mxu0 0.0
    %73 = vmatpush1.msra.mxu0 0.0
    %74 = vmatprep.subr.mxu0 0.0
    %75 = vmatpush1.msra.mxu0 0.0
    %76 = vmatprep.subr.mxu0 0.0
    %77 = vmatpush1.msra.mxu0 0.0
    %78 = vmatprep.subr.mxu0 0.0
    %79 = vmatpush1.msra.mxu0 0.0
    %80 = vmatprep.subr.mxu0 0.0
    %81 = vmatpush1.msra.mxu0 0.0
    %82 = vmatprep.subr.mxu0 0.0
    %83 = vmatpush1.msra.mxu0 0.0
    %84 = vmatprep.subr.mxu0 0.0
    %85 = vmatpush1.msra.mxu0 0.0
    %86 = vmatprep.subr.mxu0 0.0
    %87 = vmatpush1.msra.mxu0 0.0
    %88 = vmatprep.subr.mxu0 0.0
    %89 = vmatpush1.msra.mxu0 0.0
    %90 = vmatprep.subr.mxu0 0.0
    %91 = vmatpush1.msra.mxu0 0.0
    %92 = vmatprep.subr.mxu0 0.0
    %93 = vmatpush1.msra.mxu0 0.0
    %94 = vmatprep.subr.mxu0 0.0
    %95 = vmatpush1.msra.mxu0 0.0
    %96 = vmatprep.subr.mxu0 0.0
    %97 = vmatpush1.msra.mxu0 0.0
    %98 = vmatprep.subr.mxu0 0.0
    %99 = vmatpush1.msra.mxu0 0.0
    %100 = vmatprep.subr.mxu0 0.0
    %101 = vmatpush1.msra.mxu0 0.0
    %102 = vmatprep.subr.mxu0 0.0
    %103 = vmatpush1.msra.mxu0 0.0
    %104 = vmatprep.subr.mxu0 0.0
    %105 = vmatpush1.msra.mxu0 0.0
    %106 = vmatprep.subr.mxu0 0.0
    %107 = vmatpush1.msra.mxu0 0.0
    %108 = vmatprep.subr.mxu0 0.0
    %109 = vmatpush1.msra.mxu0 0.0
    %110 = vmatprep.subr.mxu0 0.0
    %111 = vmatpush1.msra.mxu0 0.0
    %112 = vmatprep.subr.mxu0 0.0
    %113 = vmatpush1.msra.mxu0 0.0
    %114 = vmatprep.subr.mxu0 0.0
    %115 = vmatpush1.msra.mxu0 0.0
    %116 = vmatprep.subr.mxu0 0.0
    %117 = vmatpush1.msra.mxu0 0.0
    %118 = vmatprep.subr.mxu0 0.0
    %119 = vmatpush1.msra.mxu0 0.0
    %120 = vmatprep.subr.mxu0 0.0
    %121 = vmatpush1.msra.mxu0 0.0
    %122 = vmatprep.subr.mxu0 0.0
    %123 = vmatpush1.msra.mxu0 0.0
    %124 = vmatprep.subr.mxu0 0.0
    %125 = vmatpush1.msra.mxu0 0.0
    %126 = vmatprep.subr.mxu0 0.0
    %127 = vmatpush1.msra.mxu0 0.0
    %128 = vmatprep.subr.mxu0 0.0
    %129 = vmatpush1.msra.mxu0 0.0
    %130 = vmatprep.mubr.f32.mxu0 0.0
    %131 = vmatmul.mubr.f32.gmra.mrb[0].mxu0 %v51
    %v132 = vpop.f32.mrb[0].mxu0
    %v133 = vadd.f32 %v47, %v132
    %v134 = vpop.f32.mrb[0].mxu0
    %135 = vmatprep.mubr.f32.mxu0 0.0
    %136 = vmatmul.mubr.f32.gmra.mrb[0].mxu0 %v54
    %v137 = vpop.f32.mrb[0].mxu0
    %v138 = vadd.f32 %v47, %v137
    %v139 = vpop.f32.mrb[0].mxu0
    %140 = vmatprep.mubr.f32.mxu0 0.0
    %141 = vmatmul.mubr.f32.gmra.mrb[0].mxu0 %v57
    %v142 = vpop.f32.mrb[0].mxu0
    %v143 = vadd.f32 %v47, %v142
    %v144 = vpop.f32.mrb[0].mxu0
    %145 = vmatprep.mubr.f32.mxu0 0.0
    %146 = vmatmul.mubr.f32.gmra.mrb[0].mxu0 %v60
    %v147 = vpop.f32.mrb[0].mxu0
    %v148 = vadd.f32 %v47, %v147
    %v149 = vpop.f32.mrb[0].mxu0
    %150 = vdwg.mxu0
    %v151 = vlaneseq
    %v152 = vshrl.u32 %v151, 7
    %v153 = vsub.s32 0, %v152
    %v154 = vrot.slane %v33, %v153
    %v155 = vmul.f32 %v154, 0.0
    %v156 = vlaneseq
    %v157 = vshrl.u32 %v156, 7
    %v158 = vsub.s32 1, %v157
    %v159 = vrot.slane %v33, %v158
    %v160 = vmul.f32 %v159, 0.0
    %v161 = vadd.f32 %v155, %v160
    %v162 = vadd.f32 %v133, %v161
    %v163 = vxor.u32 %v162, 2147483648
    %v164 = vmul.f32 %v163, 1.442695
    %v165 = vpow.pop %v164
    %v166 = vadd.f32 %v165, 1.0
    %v167 = vrcp.pop %v166
    %v168 = vmul.f32 1.0, %v167
    %v169 = vtanh.pop %v162
    %v170 = vmul.f32 %v168, 0.0
    %172 = vrot.lane.b32.xlu0 %v169, 124
    %v173 = vpop.permute.xlu0 %172
    %v175 = vmul.f32 %v168, %v173
    %177 = vrot.lane.b32.xlu0 %v175, 2
    %v178 = vpop.permute.xlu0 %177
    %v180 = vadd.f32 %v170, %v178
    %v181 = vtanh.pop %v180
    %183 = vrot.lane.b32.xlu0 %v181, 4
    %v184 = vpop.permute.xlu0 %183
    %v186 = vmul.f32 %v168, %v184
    %188 = vset.pattern.permute.xlu0 6
    %189 = vperm.xlu0 %188, %v186
    %v190 = vpop.permute.xlu0 %189
    %v192 = vlaneseq
    %v193 = vshrl.u32 %v192, 7
    %v194 = vsub.s32 0, %v193
    %v195 = vrot.slane %v35, %v194
    %v196 = vmul.f32 %v190, %v195
    %197 = vset.pattern.permute.xlu0 7
    %198 = vperm.xlu0 %197, %v186
    %v199 = vpop.permute.xlu0 %198
    %v201 = vlaneseq
    %v202 = vshrl.u32 %v201, 7
    %v203 = vsub.s32 1, %v202
    %v204 = vrot.slane %v35, %v203
    %v205 = vmul.f32 %v199, %v204
    %v206 = vadd.f32 %v196, %v205
    %v208 = vlaneseq
    %v209 = vshrl.u32 %v208, 7
    %v210 = vsub.s32 0, %v209
    %v211 = vrot.slane %v36, %v210
    %v213 = vadd.f32 %v206, %v211
    %v214 = vlaneseq
    %v215 = vshrl.u32 %v214, 7
    %v216 = vsub.s32 0, %v215
    %v217 = vrot.slane %v34, %v216
    %v218 = vmul.f32 %v217, 0.0
    %v219 = vlaneseq
    %v220 = vshrl.u32 %v219, 7
    %v221 = vsub.s32 1, %v220
    %v222 = vrot.slane %v34, %v221
    %v223 = vmul.f32 %v222, 0.0
    %v224 = vadd.f32 %v218, %v223
    %v225 = vadd.f32 %v213, %v224
    %v226 = vxor.u32 %v225, 2147483648
    %v227 = vmul.f32 %v226, 1.442695
    %v228 = vpow.pop %v227
    %v229 = vadd.f32 %v228, 1.0
    %v230 = vrcp.pop %v229
    %v231 = vmul.f32 1.0, %v230
    %v232 = vtanh.pop %v225
    %v233 = vmul.f32 %v231, 0.0
    %235 = vrot.lane.b32.xlu0 %v232, 124
    %v236 = vpop.permute.xlu0 %235
    %v238 = vmul.f32 %v231, %v236
    %240 = vrot.lane.b32.xlu0 %v238, 2
    %v241 = vpop.permute.xlu0 %240
    %v243 = vadd.f32 %v233, %v241
    %v244 = vtanh.pop %v243
    %246 = vrot.lane.b32.xlu0 %v244, 4
    %v247 = vpop.permute.xlu0 %246
    %v249 = vmul.f32 %v231, %v247
    %v250 = vmul.f32 %v190, %v154
    %v251 = vmul.f32 %v199, %v159
    %v252 = vadd.f32 %v250, %v251
    %v253 = vadd.f32 %v138, %v252
    %v254 = vxor.u32 %v253, 2147483648
    %v255 = vmul.f32 %v254, 1.442695
    %v256 = vpow.pop %v255
    %v257 = vadd.f32 %v256, 1.0
    %v258 = vrcp.pop %v257
    %v259 = vmul.f32 1.0, %v258
    %v260 = vtanh.pop %v253
    %v261 = vmul.f32 %v259, %v180
    %263 = vrot.lane.b32.xlu0 %v260, 124
    %v264 = vpop.permute.xlu0 %263
    %v266 = vmul.f32 %v259, %v264
    %268 = vrot.lane.b32.xlu0 %v266, 2
    %v269 = vpop.permute.xlu0 %268
    %v271 = vadd.f32 %v261, %v269
    %v272 = vtanh.pop %v271
    %274 = vrot.lane.b32.xlu0 %v272, 4
    %v275 = vpop.permute.xlu0 %274
    %v277 = vmul.f32 %v259, %v275
    %279 = vset.pattern.permute.xlu0 6
    %280 = vperm.xlu0 %279, %v277
    %v281 = vpop.permute.xlu0 %280
    %v283 = vmul.f32 %v281, %v195
    %284 = vset.pattern.permute.xlu0 7
    %285 = vperm.xlu0 %284, %v277
    %v286 = vpop.permute.xlu0 %285
    %v288 = vmul.f32 %v286, %v204
    %v289 = vadd.f32 %v283, %v288
    %v290 = vadd.f32 %v289, %v211
    %292 = vset.pattern.permute.xlu0 6
    %293 = vperm.xlu0 %292, %v249
    %v294 = vpop.permute.xlu0 %293
    %v296 = vmul.f32 %v294, %v217
    %297 = vset.pattern.permute.xlu0 7
    %298 = vperm.xlu0 %297, %v249
    %v299 = vpop.permute.xlu0 %298
    %v301 = vmul.f32 %v299, %v222
    %v302 = vadd.f32 %v296, %v301
    %v303 = vadd.f32 %v290, %v302
    %v304 = vxor.u32 %v303, 2147483648
    %v305 = vmul.f32 %v304, 1.442695
    %v306 = vpow.pop %v305
    %v307 = vadd.f32 %v306, 1.0
    %v308 = vrcp.pop %v307
    %v309 = vmul.f32 1.0, %v308
    %v310 = vtanh.pop %v303
    %v311 = vmul.f32 %v309, %v243
    %313 = vrot.lane.b32.xlu0 %v310, 124
    %v314 = vpop.permute.xlu0 %313
    %v316 = vmul.f32 %v309, %v314
    %318 = vrot.lane.b32.xlu0 %v316, 2
    %v319 = vpop.permute.xlu0 %318
    %v321 = vadd.f32 %v311, %v319
    %v322 = vtanh.pop %v321
    %324 = vrot.lane.b32.xlu0 %v322, 4
    %v325 = vpop.permute.xlu0 %324
    %v327 = vmul.f32 %v309, %v325
    %v328 = vmul.f32 %v281, %v154
    %v329 = vmul.f32 %v286, %v159
    %v330 = vadd.f32 %v328, %v329
    %v331 = vadd.f32 %v143, %v330
    %v332 = vxor.u32 %v331, 2147483648
    %v333 = vmul.f32 %v332, 1.442695
    %v334 = vpow.pop %v333
    %v335 = vadd.f32 %v334, 1.0
    %v336 = vrcp.pop %v335
    %v337 = vmul.f32 1.0, %v336
    %v338 = vtanh.pop %v331
    %v339 = vmul.f32 %v337, %v271
    %341 = vrot.lane.b32.xlu0 %v338, 124
    %v342 = vpop.permute.xlu0 %341
    %v344 = vmul.f32 %v337, %v342
    %346 = vrot.lane.b32.xlu0 %v344, 2
    %v347 = vpop.permute.xlu0 %346
    %v349 = vadd.f32 %v339, %v347
    %v350 = vtanh.pop %v349
    %352 = vrot.lane.b32.xlu0 %v350, 4
    %v353 = vpop.permute.xlu0 %352
    %v355 = vmul.f32 %v337, %v353
    %357 = vset.pattern.permute.xlu0 6
    %358 = vperm.xlu0 %357, %v355
    %v359 = vpop.permute.xlu0 %358
    %v361 = vmul.f32 %v359, %v195
    %362 = vset.pattern.permute.xlu0 7
    %363 = vperm.xlu0 %362, %v355
    %v364 = vpop.permute.xlu0 %363
    %v366 = vmul.f32 %v364, %v204
    %v367 = vadd.f32 %v361, %v366
    %v368 = vadd.f32 %v367, %v211
    %370 = vset.pattern.permute.xlu0 6
    %371 = vperm.xlu0 %370, %v327
    %v372 = vpop.permute.xlu0 %371
    %v374 = vmul.f32 %v372, %v217
    %375 = vset.pattern.permute.xlu0 7
    %376 = vperm.xlu0 %375, %v327
    %v377 = vpop.permute.xlu0 %376
    %v379 = vmul.f32 %v377, %v222
    %v380 = vadd.f32 %v374, %v379
    %v381 = vadd.f32 %v368, %v380
    %v382 = vxor.u32 %v381, 2147483648
    %v383 = vmul.f32 %v382, 1.442695
    %v384 = vpow.pop %v383
    %v385 = vadd.f32 %v384, 1.0
    %v386 = vrcp.pop %v385
    %v387 = vmul.f32 1.0, %v386
    %v388 = vtanh.pop %v381
    %v389 = vmul.f32 %v387, %v321
    %391 = vrot.lane.b32.xlu0 %v388, 124
    %v392 = vpop.permute.xlu0 %391
    %v394 = vmul.f32 %v387, %v392
    %396 = vrot.lane.b32.xlu0 %v394, 2
    %v397 = vpop.permute.xlu0 %396
    %v399 = vadd.f32 %v389, %v397
    %v400 = vtanh.pop %v399
    %402 = vrot.lane.b32.xlu0 %v400, 4
    %v403 = vpop.permute.xlu0 %402
    %v405 = vmul.f32 %v387, %v403
    %v406 = vmul.f32 %v359, %v154
    %v407 = vmul.f32 %v364, %v159
    %v408 = vadd.f32 %v406, %v407
    %v409 = vadd.f32 %v148, %v408
    %v410 = vxor.u32 %v409, 2147483648
    %v411 = vmul.f32 %v410, 1.442695
    %v412 = vpow.pop %v411
    %v413 = vadd.f32 %v412, 1.0
    %v414 = vrcp.pop %v413
    %v415 = vmul.f32 1.0, %v414
    %v416 = vtanh.pop %v409
    %v417 = vmul.f32 %v415, %v349
    %419 = vrot.lane.b32.xlu0 %v416, 124
    %v420 = vpop.permute.xlu0 %419
    %v422 = vmul.f32 %v415, %v420
    %424 = vrot.lane.b32.xlu0 %v422, 2
    %v425 = vpop.permute.xlu0 %424
    %v427 = vadd.f32 %v417, %v425
    %v428 = vtanh.pop %v427
    %430 = vrot.lane.b32.xlu0 %v428, 4
    %v431 = vpop.permute.xlu0 %430
    %v433 = vmul.f32 %v415, %v431
    %435 = vset.pattern.permute.xlu0 6
    %436 = vperm.xlu0 %435, %v433
    %v437 = vpop.permute.xlu0 %436
    %v439 = vmul.f32 %v437, %v195
    %440 = vset.pattern.permute.xlu0 7
    %441 = vperm.xlu0 %440, %v433
    %v442 = vpop.permute.xlu0 %441
    %v444 = vmul.f32 %v442, %v204
    %v445 = vadd.f32 %v439, %v444
    %v446 = vadd.f32 %v445, %v211
    %448 = vset.pattern.permute.xlu0 6
    %449 = vperm.xlu0 %448, %v405
    %v450 = vpop.permute.xlu0 %449
    %v452 = vmul.f32 %v450, %v217
    %453 = vset.pattern.permute.xlu0 7
    %454 = vperm.xlu0 %453, %v405
    %v455 = vpop.permute.xlu0 %454
    %v457 = vmul.f32 %v455, %v222
    %v458 = vadd.f32 %v452, %v457
    %v459 = vadd.f32 %v446, %v458
    %v460 = vxor.u32 %v459, 2147483648
    %v461 = vmul.f32 %v460, 1.442695
    %v462 = vpow.pop %v461
    %v463 = vadd.f32 %v462, 1.0
    %v464 = vrcp.pop %v463
    %v465 = vmul.f32 1.0, %v464
    %v466 = vtanh.pop %v459
    %v467 = vmul.f32 %v465, %v399
    %469 = vrot.lane.b32.xlu0 %v466, 124
    %v470 = vpop.permute.xlu0 %469
    %v472 = vmul.f32 %v465, %v470
    %474 = vrot.lane.b32.xlu0 %v472, 2
    %v475 = vpop.permute.xlu0 %474
    %v477 = vadd.f32 %v467, %v475
    %v478 = vtanh.pop %v477
    %480 = vrot.lane.b32.xlu0 %v478, 4
    %v481 = vpop.permute.xlu0 %480
    %v483 = vmul.f32 %v465, %v481
    %v484 = vld [vmem:[%s7] sm:$0x3]
    %486 = vset.pattern.permute.xlu0 6
    %487 = vperm.xlu0 %486, %v483
    %v488 = vpop.permute.xlu0 %487
    %v490 = vlaneseq
    %v491 = vshrl.u32 %v490, 7
    %v492 = vsub.s32 0, %v491
    %v493 = vrot.slane %v484, %v492
    %v494 = vmul.f32 %v488, %v493
    %495 = vset.pattern.permute.xlu0 7
    %496 = vperm.xlu0 %495, %v483
    %v497 = vpop.permute.xlu0 %496
    %v499 = vlaneseq
    %v500 = vshrl.u32 %v499, 7
    %v501 = vsub.s32 1, %v500
    %v502 = vrot.slane %v484, %v501
    %v503 = vmul.f32 %v497, %v502
    %v504 = vadd.f32 %v494, %v503
    %v505 = vld [vmem:[%s8] sm:$0x1]
    %v507 = vlaneseq
    %v508 = vshrl.u32 %v507, 7
    %v509 = vsub.s32 0, %v508
    %v510 = vrot.slane %v505, %v509
    %v512 = vadd.f32 %v504, %v510
    %vm513 = vcmask 23556
    %514 = vst.msk [vmem:[#allocation2 - $0x4] sm:$0xf0] %vm513, %v512
    // Predicated region
    $region38: #{lstm_model_forward.1} parent=1 // pred_check
      _
    $region39: #{lstm_model_forward.1} parent=1 // pred_check_branch
      %516 = sbr.rel (0) target = $region41
    $region40: #{lstm_model_forward.1} parent=1 // pred_region
      %s518 = ssub.s32 64, 64
      %519 = vsyncadd [#allocation3], %s518
      %s521 = sshll.u32 [#allocation2], 4
      %s522 = int_to_ptr.vmem [resolvable:$true] %s521
      %524 = dma.vmem_to_hbm [thread:$0]  %s522, 64, %s9, [#allocation3]
    $region41: #{lstm_model_forward.1} parent=1 // pred_fallthru
      _
    // Predicated region
    $region42: #{lstm_model_forward.1} parent=1 // pred_check
      _
    $region43: #{lstm_model_forward.1} parent=1 // pred_check_branch
      %526 = sbr.rel (0) target = $region45
    $region44: #{lstm_model_forward.1} parent=1 // pred_region
      %527 = dma.done [#allocation3], 64
    $region45: #{lstm_model_forward.1} parent=1 // pred_fallthru
      _
    %528 = vsyncpa [#allocation3], 1

</llo_original>
